<compile_context>
chip_gen: v7x
topology: tpu7x:2x2x1
jax: 0.10.0
libtpu: 0.0.40
codegen_flags: <defaults>
</compile_context>

<pallas_src>
import functools

import numpy as np
import jax
import jax.numpy as jnp
from jax.experimental import pallas as pl
from jax.experimental.pallas import tpu as pltpu


def _round_up(v, m):
    return (v + m - 1) // m * m


def _weird_bn_train_kernel(scal_ref, mask_ref, x_ref, out_ref, *, eps):
    """One channel tile: masked stats via MXU + rsqrt normalize.

    scal_ref : SMEM f32[4]  = [n_g, 1/n_g, 1/n_s, 1/(n_g+1)]
    mask_ref : VMEM f32[8, N_pad]   row0 = ghost mask, row1 = valid mask
    x_ref    : VMEM [N_pad, TILE_C]
    out_ref  : VMEM [N_pad, TILE_C]
    """
    x = x_ref[...].astype(jnp.float32)          # [N_pad, TILE_C]
    m = mask_ref[...]                           # [8, N_pad]

    # Masked axis-0 reductions on the MXU (separate VLIW slot from the VPU).
    # HIGHEST precision keeps the f32 sums accurate enough for E[x^2]-mean^2.
    sums = jnp.dot(m, x,
                   precision=jax.lax.Precision.HIGHEST,
                   preferred_element_type=jnp.float32)       # [8, TILE_C]
    sumsq = jnp.dot(m, x * x,
                    precision=jax.lax.Precision.HIGHEST,
                    preferred_element_type=jnp.float32)      # [8, TILE_C]

    n_g = scal_ref[0]
    inv_ng = scal_ref[1]
    inv_ns = scal_ref[2]
    inv_ng1 = scal_ref[3]        # 1 / (n_g + 1)

    g_sum = sums[0:1, :]         # ghost sums            [1, TILE_C]
    t_sum = sums[1:2, :]         # totals (valid rows)
    g_sq = sumsq[0:1, :]
    t_sq = sumsq[1:2, :]

    g_mean = g_sum * inv_ng
    s_mean = (t_sum - g_sum) * inv_ns
    g_var = g_sq * inv_ng - g_mean * g_mean          # population variance
    s_var = (t_sq - g_sq) * inv_ns - s_mean * s_mean

    # Merge exactly like the reference (updated `mean` feeds the var term).
    mean = g_mean + (s_mean - g_mean) * inv_ng1
    var = (n_g * g_var + s_var + (s_mean - mean) ** 2 * (n_g * inv_ng1)) * inv_ng1

    inv_std = jax.lax.rsqrt(var + eps)               # [1, TILE_C], EUP
    out_ref[...] = ((x - mean) * inv_std).astype(out_ref.dtype)


def weird_graph_batch_norm(batched_data, *, ghost_samples, weight, bias, eps=1e-5):
    """Training-mode forward of WeirdGraphBatchNorm.

    batched_data = (x [N,C], edge_index [2,E] i32, edge_attr [E,D], batch [N] i32)
    Returns (normalized_x, edge_index, edge_attr, batch).

    Precondition (same as the PyTorch reference): graph ids in `batch` are
    dense 0..G-1 and the last `ghost_samples` graphs are the ghosts; both the
    ghost set and the sample set must be non-empty (otherwise NaN/Inf, as in
    the reference).
    """
    del weight, bias  # unused: the reference discards the affine result
    x, edge_index, edge_attr, batch = batched_data
    n, c = x.shape

    # ---- scalar / mask prep (hoisted out of the kernel) --------------------
    batch_i = batch.astype(jnp.int32)
    num_examples = jnp.max(batch_i)
    ghost_mask = (batch_i > num_examples - ghost_samples).astype(jnp.float32)  # [N]
    n_g = jnp.sum(ghost_mask)
    n_s = jnp.float32(n) - n_g
    scalars = jnp.stack(
        [n_g, 1.0 / n_g, 1.0 / n_s, 1.0 / (n_g + 1.0)]
    ).astype(jnp.float32)                                                      # [4]

    # ---- layout / tile sizing ----------------------------------------------
    n_pad = _round_up(n, 8)
    # x + out tiles, double-buffered: 2 arrays * 2 buffers * n_pad * tile_c * 4B.
    budget = 20 * 1024 * 1024
    max_tile_c = max(128, (budget // (16 * n_pad)) // 128 * 128)
    tile_c = int(min(_round_up(c, 128), max_tile_c, 1024))
    c_pad = _round_up(c, tile_c)

    x_p = jnp.pad(x, ((0, n_pad - n), (0, c_pad - c)))
    ghost_row = jnp.pad(ghost_mask, (0, n_pad - n))
    valid_row = jnp.pad(jnp.ones((n,), jnp.float32), (0, n_pad - n))
    maskmat = jnp.zeros((8, n_pad), jnp.float32)
    maskmat = maskmat.at[0, :].set(ghost_row).at[1, :].set(valid_row)

    kernel = functools.partial(_weird_bn_train_kernel, eps=eps)
    grid = (c_pad // tile_c,)

    out_padded = pl.pallas_call(
        kernel,
        out_shape=jax.ShapeDtypeStruct((n_pad, c_pad), x.dtype),
        grid=grid,
        in_specs=[
            pl.BlockSpec(memory_space=pltpu.MemorySpace.SMEM),   # scalars
            pl.BlockSpec((8, n_pad), lambda j: (0, 0)),          # mask matrix
            pl.BlockSpec((n_pad, tile_c), lambda j: (0, j)),     # x channel tile
        ],
        out_specs=pl.BlockSpec((n_pad, tile_c), lambda j: (0, j)),
        compiler_params=pltpu.CompilerParams(
            dimension_semantics=("parallel",),
            vmem_limit_bytes=32 * 1024 * 1024,
        ),
    )(scalars, maskmat, x_p)

    tmp = out_padded[:n, :c]
    return (tmp, edge_index, edge_attr, batch)


def _numpy_reference(x, batch, ghost_samples, eps=1e-5):
    """Pure-numpy transcription of the PyTorch training forward."""
    x = np.asarray(x, dtype=np.float64)
    batch = np.asarray(batch)
    num_examples = batch.max()
    ghost_mask = batch > num_examples - ghost_samples
    sample = x[~ghost_mask]
    ghost = x[ghost_mask]
    n_g = ghost.shape[0]
    mean = ghost.mean(0, keepdims=True)
    var = ghost.var(0, keepdims=True)          # unbiased=False
    s_mean = sample.mean(0, keepdims=True)
    s_var = sample.var(0, keepdims=True)
    mean = mean + (s_mean - mean) / (1 + n_g)
    var = n_g * var + s_var + (s_mean - mean) ** 2 * n_g / (n_g + 1)
    var = var / (n_g + 1)
    return (x - mean) / np.sqrt(var + eps)


if __name__ == "__main__":
    key = jax.random.PRNGKey(0)
    k1, k2 = jax.random.split(key)

    num_graphs, nodes_per_graph, C = 8, 8, 32
    N = num_graphs * nodes_per_graph
    ghost_samples = 2

    x = jax.random.normal(k1, (N, C), dtype=jnp.float32)
    batch = jnp.repeat(jnp.arange(num_graphs, dtype=jnp.int32), nodes_per_graph)
    E = 128
    edge_index = jax.random.randint(k2, (2, E), 0, N, dtype=jnp.int32)
    edge_attr = jnp.ones((E, 4), dtype=jnp.float32)

    # nn.BatchNorm1d(C) parameters (PyTorch default init).  They do not
    # influence the training-mode output (reference discards the affine
    # result) but are created to mirror the module's __init__.
    weight = jnp.ones((C,), dtype=jnp.float32)
    bias = jnp.zeros((C,), dtype=jnp.float32)

    out_x, out_ei, out_ea, out_b = weird_graph_batch_norm(
        (x, edge_index, edge_attr, batch),
        ghost_samples=ghost_samples,
        weight=weight,
        bias=bias,
    )
    jax.block_until_ready(out_x)

    ref = _numpy_reference(np.asarray(x), np.asarray(batch), ghost_samples)
    np.testing.assert_allclose(np.asarray(out_x), ref, rtol=1e-4, atol=1e-4)

    print("KERNEL_OK")
</pallas_src>

<mosaic_0001>
module attributes {stable_mosaic.version = 11 : i64} {
  func.func @_weird_bn_train_kernel(%arg0: i32, %arg1: memref<4xf32, #tpu.memory_space<smem>>, %arg2: memref<8x64xf32, #tpu.memory_space<vmem>>, %arg3: memref<64x128xf32, #tpu.memory_space<vmem>>, %arg4: memref<64x128xf32, #tpu.memory_space<vmem>>) attributes {dimension_semantics = [#tpu.dimension_semantics<parallel>], iteration_bounds = array<i64: 1>, scalar_prefetch = 0 : i64, scratch_operands = 0 : i64, tpu.core_type = #tpu.core_type<tc>, window_params = [{transform_indices = @transform_0, window_bounds = array<i64: 4>}, {pipeline_mode = #tpu.pipeline_mode<synchronous>, transform_indices = @transform_1, window_bounds = array<i64: 8, 64>}, {transform_indices = @transform_2, window_bounds = array<i64: 64, 128>}, {transform_indices = @transform_3, window_bounds = array<i64: 64, 128>}]} {
    %c0 = arith.constant 0 : index
    %c0_0 = arith.constant 0 : index
    %0 = vector.load %arg3[%c0, %c0_0] : memref<64x128xf32, #tpu.memory_space<vmem>>, vector<64x128xf32>
    %c0_1 = arith.constant 0 : index
    %c0_2 = arith.constant 0 : index
    %1 = vector.load %arg2[%c0_1, %c0_2] : memref<8x64xf32, #tpu.memory_space<vmem>>, vector<8x64xf32>
    %cst = arith.constant dense<0.000000e+00> : vector<8x128xf32>
    %2 = tpu.matmul %1, %0, %cst {dimension_numbers = #tpu.dot_dimension_numbers<[1], [0], [0], [1], [0, 0, 1, 1], [], []>, precision = #tpu.contract_precision<fp32>} : vector<8x64xf32>, vector<64x128xf32>, vector<8x128xf32> -> vector<8x128xf32>
    %3 = arith.mulf %0, %0 : vector<64x128xf32>
    %cst_3 = arith.constant dense<0.000000e+00> : vector<8x128xf32>
    %4 = tpu.matmul %1, %3, %cst_3 {dimension_numbers = #tpu.dot_dimension_numbers<[1], [0], [0], [1], [0, 0, 1, 1], [], []>, precision = #tpu.contract_precision<fp32>} : vector<8x64xf32>, vector<64x128xf32>, vector<8x128xf32> -> vector<8x128xf32>
    %c0_4 = arith.constant 0 : index
    %5 = memref.load %arg1[%c0_4] : memref<4xf32, #tpu.memory_space<smem>>
    %c1 = arith.constant 1 : index
    %6 = memref.load %arg1[%c1] : memref<4xf32, #tpu.memory_space<smem>>
    %c2 = arith.constant 2 : index
    %7 = memref.load %arg1[%c2] : memref<4xf32, #tpu.memory_space<smem>>
    %c3 = arith.constant 3 : index
    %8 = memref.load %arg1[%c3] : memref<4xf32, #tpu.memory_space<smem>>
    %9 = vector.extract_strided_slice %2 {offsets = [0, 0], sizes = [1, 128], strides = [1, 1]} : vector<8x128xf32> to vector<1x128xf32>
    %10 = vector.extract_strided_slice %2 {offsets = [1, 0], sizes = [1, 128], strides = [1, 1]} : vector<8x128xf32> to vector<1x128xf32>
    %11 = vector.extract_strided_slice %4 {offsets = [0, 0], sizes = [1, 128], strides = [1, 1]} : vector<8x128xf32> to vector<1x128xf32>
    %12 = vector.extract_strided_slice %4 {offsets = [1, 0], sizes = [1, 128], strides = [1, 1]} : vector<8x128xf32> to vector<1x128xf32>
    %13 = vector.broadcast %6 : f32 to vector<1x128xf32>
    %14 = arith.mulf %9, %13 : vector<1x128xf32>
    %15 = arith.subf %10, %9 : vector<1x128xf32>
    %16 = vector.broadcast %7 : f32 to vector<1x128xf32>
    %17 = arith.mulf %15, %16 : vector<1x128xf32>
    %18 = vector.broadcast %6 : f32 to vector<1x128xf32>
    %19 = arith.mulf %11, %18 : vector<1x128xf32>
    %20 = arith.mulf %14, %14 : vector<1x128xf32>
    %21 = arith.subf %19, %20 : vector<1x128xf32>
    %22 = arith.subf %12, %11 : vector<1x128xf32>
    %23 = vector.broadcast %7 : f32 to vector<1x128xf32>
    %24 = arith.mulf %22, %23 : vector<1x128xf32>
    %25 = arith.mulf %17, %17 : vector<1x128xf32>
    %26 = arith.subf %24, %25 : vector<1x128xf32>
    %27 = arith.subf %17, %14 : vector<1x128xf32>
    %28 = vector.broadcast %8 : f32 to vector<1x128xf32>
    %29 = arith.mulf %27, %28 : vector<1x128xf32>
    %30 = arith.addf %14, %29 : vector<1x128xf32>
    %31 = vector.broadcast %5 : f32 to vector<1x128xf32>
    %32 = arith.mulf %31, %21 : vector<1x128xf32>
    %33 = arith.addf %32, %26 : vector<1x128xf32>
    %34 = arith.subf %17, %30 : vector<1x128xf32>
    %35 = arith.mulf %34, %34 : vector<1x128xf32>
    %36 = arith.mulf %5, %8 : f32
    %37 = vector.broadcast %36 : f32 to vector<1x128xf32>
    %38 = arith.mulf %35, %37 : vector<1x128xf32>
    %39 = arith.addf %33, %38 : vector<1x128xf32>
    %40 = vector.broadcast %8 : f32 to vector<1x128xf32>
    %41 = arith.mulf %39, %40 : vector<1x128xf32>
    %cst_5 = arith.constant 9.99999974E-6 : f32
    %42 = vector.broadcast %cst_5 : f32 to vector<1x128xf32>
    %43 = arith.addf %41, %42 : vector<1x128xf32>
    %44 = math.rsqrt %43 : vector<1x128xf32>
    %45 = vector.broadcast %30 : vector<1x128xf32> to vector<64x128xf32>
    %46 = arith.subf %0, %45 : vector<64x128xf32>
    %47 = vector.broadcast %44 : vector<1x128xf32> to vector<64x128xf32>
    %48 = arith.mulf %46, %47 : vector<64x128xf32>
    %c0_6 = arith.constant 0 : index
    %c0_7 = arith.constant 0 : index
    %49 = vector.load %arg4[%c0_6, %c0_7] : memref<64x128xf32, #tpu.memory_space<vmem>>, vector<64x128xf32>
    tpu.vector_store %arg4[%c0_6, %c0_7], %48 {strides = array<i32>} : memref<64x128xf32, #tpu.memory_space<vmem>>, vector<64x128xf32>,
    return
  }
  func.func @transform_0(%arg0: i32) -> i32 {
    %c0_i32 = arith.constant 0 : i32
    %c0_i32_0 = arith.constant 0 : i32
    return %c0_i32 : i32
  }
  func.func @transform_1(%arg0: i32) -> (i32, i32) {
    %c0_i32 = arith.constant 0 : i32
    %c0_i32_0 = arith.constant 0 : i32
    %c0_i32_1 = arith.constant 0 : i32
    return %c0_i32, %c0_i32_0 : i32, i32
  }
  func.func @transform_2(%arg0: i32) -> (i32, i32) {
    %c0_i32 = arith.constant 0 : i32
    %c0_i32_0 = arith.constant 0 : i32
    return %c0_i32, %arg0 : i32, i32
  }
  func.func @transform_3(%arg0: i32) -> (i32, i32) {
    %c0_i32 = arith.constant 0 : i32
    %c0_i32_0 = arith.constant 0 : i32
    return %c0_i32, %arg0 : i32, i32
  }
}

</mosaic_0001>

<llo_original>
// kernel: tpu_custom_call.1
$region0: #{tpu_custom_call.1}
  #allocation0 [shape = 'u32[]', space=smem, size = 0x4, offset = 0x4, fixed_abs, tag = 'smem constant byte address 0x4 - core index']
  #allocation1 [shape = 'u32[144,128]{1,0:T(1,128)}', space=vmem, size = 0x12000, scoped, tag = 'internal scratch']
  %s0 = inlined_call_operand.hbm [shape: f32[4], index: 0, kind: input, shape index: {}]
  %s1 = inlined_call_operand.hbm [shape: f32[8,64], index: 1, kind: input, shape index: {}]
  %s2 = inlined_call_operand.hbm [shape: f32[64,128], index: 2, kind: input, shape index: {}]
  %s3 = inlined_call_operand.hbm [shape: f32[64,128], index: 3, kind: output, shape index: {}]
  %s4 = sld [smem:[#allocation0]]
  $region34: #{tpu_custom_call.1} parent=0
    _
  %s6 = ssub.s32 1, %s4
  %s7 = scalar_select 0, %s6, %s4
  $region1: #{tpu_custom_call.1} parent=0
    #allocation2 [shape = 'u8[512]{0}', space=smem, size = 0x200, scoped, tag = 'input window, operand 0, single buffered']
    #allocation3 [shape = 's32[1]{0}', space=sflag, size = 0x4, scoped, tag = 'scoped memory for tpu_custom_call.1']
    #allocation4 [shape = 's32[1]{0}', space=sflag, size = 0x4, scoped, tag = 'scoped memory for tpu_custom_call.1']
    #allocation5 [shape = 's32[1]{0}', space=sflag, size = 0x4, scoped, tag = 'scoped memory for tpu_custom_call.1']
    #allocation6 [shape = 'u8[4096]{0}', space=vmem, size = 0x1000, scoped, tag = 'input window, operand 1, single buffered']
    #allocation7 [shape = 'u8[32768]{0}', space=vmem, size = 0x8000, scoped, tag = 'input window, operand 2, single buffered']
    #allocation8 [shape = 's32[1]{0}', space=sflag, size = 0x4, scoped, tag = 'scoped memory for tpu_custom_call.1']
    #allocation9 [shape = 'u8[32768]{0}', space=vmem, size = 0x8000, scoped, tag = 'output window, operand 0, single buffered']
    %8 = vsyncpa [#allocation5], 0
    %9 = vsyncpa [#allocation3], 0
    %10 = vsyncpa [#allocation8], 0
    %11 = vsyncpa [#allocation4], 0
    // Predicated region
    $region2: #{tpu_custom_call.1} parent=1 // pred_check
      _
    $region3: #{tpu_custom_call.1} parent=1 // pred_check_branch
      %13 = sbr.rel (0) target = $region5
    $region4: #{tpu_custom_call.1} parent=1 // pred_region
      %s15 = ssub.s32 16, 16
      %16 = vsyncadd [#allocation5], %s15
      %19 = dma.hbm_to_smem %s0, 16, [#allocation2], [#allocation5]
    $region5: #{tpu_custom_call.1} parent=1 // pred_fallthru
      _
    // Predicated region
    $region6: #{tpu_custom_call.1} parent=1 // pred_check
      _
    $region7: #{tpu_custom_call.1} parent=1 // pred_check_branch
      %21 = sbr.rel (0) target = $region9
    $region8: #{tpu_custom_call.1} parent=1 // pred_region
      %s23 = ssub.s32 128, 128
      %24 = vsyncadd [#allocation3], %s23
      %s26 = sshll.u32 [#allocation6], 4
      %s27 = int_to_ptr.vmem [resolvable:$true] %s26
      %29 = dma.hbm_to_vmem [thread:$0]  %s1, 128, %s27, [#allocation3]
    $region9: #{tpu_custom_call.1} parent=1 // pred_fallthru
      _
    // Predicated region
    $region10: #{tpu_custom_call.1} parent=1 // pred_check
      _
    $region11: #{tpu_custom_call.1} parent=1 // pred_check_branch
      %31 = sbr.rel (0) target = $region13
    $region12: #{tpu_custom_call.1} parent=1 // pred_region
      %s33 = ssub.s32 1024, 1024
      %34 = vsyncadd [#allocation8], %s33
      %s35 = sshll.u32 [#allocation7], 4
      %s36 = int_to_ptr.vmem [resolvable:$true] %s35
      %41 = dma.hbm_to_vmem [thread:$0]  %s2, 1024, %s36, [#allocation8], 128, 128, 8
    $region13: #{tpu_custom_call.1} parent=1 // pred_fallthru
      _
    // Predicated region
    $region14: #{tpu_custom_call.1} parent=1 // pred_check
      _
    $region15: #{tpu_custom_call.1} parent=1 // pred_check_branch
      %43 = sbr.rel (0) target = $region17
    $region16: #{tpu_custom_call.1} parent=1 // pred_region
      %44 = dma.done [#allocation5], 16
    $region17: #{tpu_custom_call.1} parent=1 // pred_fallthru
      _
    // Predicated region
    $region18: #{tpu_custom_call.1} parent=1 // pred_check
      _
    $region19: #{tpu_custom_call.1} parent=1 // pred_check_branch
      %46 = sbr.rel (0) target = $region21
    $region20: #{tpu_custom_call.1} parent=1 // pred_region
      %47 = dma.done [#allocation3], 128
    $region21: #{tpu_custom_call.1} parent=1 // pred_fallthru
      _
    // Predicated region
    $region22: #{tpu_custom_call.1} parent=1 // pred_check
      _
    $region23: #{tpu_custom_call.1} parent=1 // pred_check_branch
      %49 = sbr.rel (0) target = $region25
    $region24: #{tpu_custom_call.1} parent=1 // pred_region
      %50 = dma.done [#allocation8], 1024
    $region25: #{tpu_custom_call.1} parent=1 // pred_fallthru
      _
    %51 = sfence
    %v52 = vld [vmem:[#allocation7] sm:$0xff]
    %v53 = vld [vmem:[#allocation7 + $0x8] sm:$0xff]
    %v54 = vld [vmem:[#allocation7 + $0x10] sm:$0xff]
    %v55 = vld [vmem:[#allocation7 + $0x18] sm:$0xff]
    %v56 = vld [vmem:[#allocation7 + $0x20] sm:$0xff]
    %v57 = vld [vmem:[#allocation7 + $0x28] sm:$0xff]
    %v58 = vld [vmem:[#allocation7 + $0x30] sm:$0xff]
    %v59 = vld [vmem:[#allocation7 + $0x38] sm:$0xff]
    %v60 = vld [vmem:[#allocation6] sm:$0xff]
    %vm61 = vcmask 523264
    %v63 = vsel %vm61, %v60, 0
    %65 = vmatprep.subr.mxu0 0.0
    %v66 = vand.u32 %v52, 4294901760
    %67 = vmatpush1.msra.mxu0 %v66
    %68 = vmatprep.subr.mxu0 0.0
    %v69 = vand.u32 %v53, 4294901760
    %70 = vmatpush1.msra.mxu0 %v69
    %71 = vmatprep.subr.mxu0 0.0
    %v72 = vand.u32 %v54, 4294901760
    %73 = vmatpush1.msra.mxu0 %v72
    %74 = vmatprep.subr.mxu0 0.0
    %v75 = vand.u32 %v55, 4294901760
    %76 = vmatpush1.msra.mxu0 %v75
    %77 = vmatprep.subr.mxu0 0.0
    %v78 = vand.u32 %v56, 4294901760
    %79 = vmatpush1.msra.mxu0 %v78
    %80 = vmatprep.subr.mxu0 0.0
    %v81 = vand.u32 %v57, 4294901760
    %82 = vmatpush1.msra.mxu0 %v81
    %83 = vmatprep.subr.mxu0 0.0
    %v84 = vand.u32 %v58, 4294901760
    %85 = vmatpush1.msra.mxu0 %v84
    %86 = vmatprep.subr.mxu0 0.0
    %v87 = vand.u32 %v59, 4294901760
    %88 = vmatpush1.msra.mxu0 %v87
    %89 = vmatprep.subr.mxu0 0.0
    %90 = vmatpush1.msra.mxu0 0.0
    %91 = vmatprep.subr.mxu0 0.0
    %92 = vmatpush1.msra.mxu0 0.0
    %93 = vmatprep.subr.mxu0 0.0
    %94 = vmatpush1.msra.mxu0 0.0
    %95 = vmatprep.subr.mxu0 0.0
    %96 = vmatpush1.msra.mxu0 0.0
    %97 = vmatprep.subr.mxu0 0.0
    %98 = vmatpush1.msra.mxu0 0.0
    %99 = vmatprep.subr.mxu0 0.0
    %100 = vmatpush1.msra.mxu0 0.0
    %101 = vmatprep.subr.mxu0 0.0
    %102 = vmatpush1.msra.mxu0 0.0
    %103 = vmatprep.subr.mxu0 0.0
    %104 = vmatpush1.msra.mxu0 0.0
    %105 = vmatprep.subr.mxu0 0.0
    %106 = vmatpush1.msra.mxu0 0.0
    %107 = vmatprep.subr.mxu0 0.0
    %108 = vmatpush1.msra.mxu0 0.0
    %109 = vmatprep.subr.mxu0 0.0
    %110 = vmatpush1.msra.mxu0 0.0
    %111 = vmatprep.subr.mxu0 0.0
    %112 = vmatpush1.msra.mxu0 0.0
    %113 = vmatprep.subr.mxu0 0.0
    %114 = vmatpush1.msra.mxu0 0.0
    %115 = vmatprep.subr.mxu0 0.0
    %116 = vmatpush1.msra.mxu0 0.0
    %117 = vmatprep.subr.mxu0 0.0
    %118 = vmatpush1.msra.mxu0 0.0
    %119 = vmatprep.subr.mxu0 0.0
    %120 = vmatpush1.msra.mxu0 0.0
    %121 = vmatprep.subr.mxu0 0.0
    %122 = vmatpush1.msra.mxu0 0.0
    %123 = vmatprep.subr.mxu0 0.0
    %124 = vmatpush1.msra.mxu0 0.0
    %125 = vmatprep.subr.mxu0 0.0
    %126 = vmatpush1.msra.mxu0 0.0
    %127 = vmatprep.subr.mxu0 0.0
    %128 = vmatpush1.msra.mxu0 0.0
    %129 = vmatprep.subr.mxu0 0.0
    %130 = vmatpush1.msra.mxu0 0.0
    %131 = vmatprep.subr.mxu0 0.0
    %132 = vmatpush1.msra.mxu0 0.0
    %133 = vmatprep.subr.mxu0 0.0
    %134 = vmatpush1.msra.mxu0 0.0
    %135 = vmatprep.subr.mxu0 0.0
    %136 = vmatpush1.msra.mxu0 0.0
    %137 = vmatprep.mubr.f32.mxu0 0.0
    %v138 = vand.u32 %v63, 4294901760
    %v139 = vsub.f32 %v63, %v138
    %v140 = vand.u32 %v139, 4294901760
    %v141 = vsub.f32 %v139, %v140
    %v142 = vand.u32 %v141, 4294901760
    %143 = vmatmul.mubr.f32.gmra.mrb[0].mxu0 %v142
    %v144 = vpop.f32.mrb[0].mxu0
    %v145 = vadd.f32 0.0, %v144
    %v146 = vpop.f32.mrb[0].mxu0
    %147 = vdwg.mxu0
    %148 = vmatprep.subr.mxu0 0.0
    %v149 = vand.u32 %v52, 4294901760
    %v150 = vsub.f32 %v52, %v149
    %v151 = vand.u32 %v150, 4294901760
    %v152 = vsub.f32 %v150, %v151
    %v153 = vand.u32 %v152, 4294901760
    %154 = vmatpush1.msra.mxu0 %v153
    %155 = vmatprep.subr.mxu0 0.0
    %v156 = vand.u32 %v53, 4294901760
    %v157 = vsub.f32 %v53, %v156
    %v158 = vand.u32 %v157, 4294901760
    %v159 = vsub.f32 %v157, %v158
    %v160 = vand.u32 %v159, 4294901760
    %161 = vmatpush1.msra.mxu0 %v160
    %162 = vmatprep.subr.mxu0 0.0
    %v163 = vand.u32 %v54, 4294901760
    %v164 = vsub.f32 %v54, %v163
    %v165 = vand.u32 %v164, 4294901760
    %v166 = vsub.f32 %v164, %v165
    %v167 = vand.u32 %v166, 4294901760
    %168 = vmatpush1.msra.mxu0 %v167
    %169 = vmatprep.subr.mxu0 0.0
    %v170 = vand.u32 %v55, 4294901760
    %v171 = vsub.f32 %v55, %v170
    %v172 = vand.u32 %v171, 4294901760
    %v173 = vsub.f32 %v171, %v172
    %v174 = vand.u32 %v173, 4294901760
    %175 = vmatpush1.msra.mxu0 %v174
    %176 = vmatprep.subr.mxu0 0.0
    %v177 = vand.u32 %v56, 4294901760
    %v178 = vsub.f32 %v56, %v177
    %v179 = vand.u32 %v178, 4294901760
    %v180 = vsub.f32 %v178, %v179
    %v181 = vand.u32 %v180, 4294901760
    %182 = vmatpush1.msra.mxu0 %v181
    %183 = vmatprep.subr.mxu0 0.0
    %v184 = vand.u32 %v57, 4294901760
    %v185 = vsub.f32 %v57, %v184
    %v186 = vand.u32 %v185, 4294901760
    %v187 = vsub.f32 %v185, %v186
    %v188 = vand.u32 %v187, 4294901760
    %189 = vmatpush1.msra.mxu0 %v188
    %190 = vmatprep.subr.mxu0 0.0
    %v191 = vand.u32 %v58, 4294901760
    %v192 = vsub.f32 %v58, %v191
    %v193 = vand.u32 %v192, 4294901760
    %v194 = vsub.f32 %v192, %v193
    %v195 = vand.u32 %v194, 4294901760
    %196 = vmatpush1.msra.mxu0 %v195
    %197 = vmatprep.subr.mxu0 0.0
    %v198 = vand.u32 %v59, 4294901760
    %v199 = vsub.f32 %v59, %v198
    %v200 = vand.u32 %v199, 4294901760
    %v201 = vsub.f32 %v199, %v200
    %v202 = vand.u32 %v201, 4294901760
    %203 = vmatpush1.msra.mxu0 %v202
    %204 = vmatprep.subr.mxu0 0.0
    %205 = vmatpush1.msra.mxu0 0.0
    %206 = vmatprep.subr.mxu0 0.0
    %207 = vmatpush1.msra.mxu0 0.0
    %208 = vmatprep.subr.mxu0 0.0
    %209 = vmatpush1.msra.mxu0 0.0
    %210 = vmatprep.subr.mxu0 0.0
    %211 = vmatpush1.msra.mxu0 0.0
    %212 = vmatprep.subr.mxu0 0.0
    %213 = vmatpush1.msra.mxu0 0.0
    %214 = vmatprep.subr.mxu0 0.0
    %215 = vmatpush1.msra.mxu0 0.0
    %216 = vmatprep.subr.mxu0 0.0
    %217 = vmatpush1.msra.mxu0 0.0
    %218 = vmatprep.subr.mxu0 0.0
    %219 = vmatpush1.msra.mxu0 0.0
    %220 = vmatprep.subr.mxu0 0.0
    %221 = vmatpush1.msra.mxu0 0.0
    %222 = vmatprep.subr.mxu0 0.0
    %223 = vmatpush1.msra.mxu0 0.0
    %224 = vmatprep.subr.mxu0 0.0
    %225 = vmatpush1.msra.mxu0 0.0
    %226 = vmatprep.subr.mxu0 0.0
    %227 = vmatpush1.msra.mxu0 0.0
    %228 = vmatprep.subr.mxu0 0.0
    %229 = vmatpush1.msra.mxu0 0.0
    %230 = vmatprep.subr.mxu0 0.0
    %231 = vmatpush1.msra.mxu0 0.0
    %232 = vmatprep.subr.mxu0 0.0
    %233 = vmatpush1.msra.mxu0 0.0
    %234 = vmatprep.subr.mxu0 0.0
    %235 = vmatpush1.msra.mxu0 0.0
    %236 = vmatprep.subr.mxu0 0.0
    %237 = vmatpush1.msra.mxu0 0.0
    %238 = vmatprep.subr.mxu0 0.0
    %239 = vmatpush1.msra.mxu0 0.0
    %240 = vmatprep.subr.mxu0 0.0
    %241 = vmatpush1.msra.mxu0 0.0
    %242 = vmatprep.subr.mxu0 0.0
    %243 = vmatpush1.msra.mxu0 0.0
    %244 = vmatprep.subr.mxu0 0.0
    %245 = vmatpush1.msra.mxu0 0.0
    %246 = vmatprep.subr.mxu0 0.0
    %247 = vmatpush1.msra.mxu0 0.0
    %248 = vmatprep.subr.mxu0 0.0
    %249 = vmatpush1.msra.mxu0 0.0
    %250 = vmatprep.subr.mxu0 0.0
    %251 = vmatpush1.msra.mxu0 0.0
    %252 = vmatprep.mubr.f32.mxu0 0.0
    %v253 = vand.u32 %v63, 4294901760
    %254 = vmatmul.mubr.f32.gmra.mrb[0].mxu0 %v253
    %v255 = vpop.f32.mrb[0].mxu0
    %v256 = vadd.f32 %v145, %v255
    %v257 = vpop.f32.mrb[0].mxu0
    %258 = vdwg.mxu0
    %259 = vmatprep.subr.mxu0 0.0
    %v260 = vand.u32 %v52, 4294901760
    %v261 = vsub.f32 %v52, %v260
    %262 = vmatpush1.msra.mxu0 %v261
    %263 = vmatprep.subr.mxu0 0.0
    %v264 = vand.u32 %v53, 4294901760
    %v265 = vsub.f32 %v53, %v264
    %266 = vmatpush1.msra.mxu0 %v265
    %267 = vmatprep.subr.mxu0 0.0
    %v268 = vand.u32 %v54, 4294901760
    %v269 = vsub.f32 %v54, %v268
    %270 = vmatpush1.msra.mxu0 %v269
    %271 = vmatprep.subr.mxu0 0.0
    %v272 = vand.u32 %v55, 4294901760
    %v273 = vsub.f32 %v55, %v272
    %274 = vmatpush1.msra.mxu0 %v273
    %275 = vmatprep.subr.mxu0 0.0
    %v276 = vand.u32 %v56, 4294901760
    %v277 = vsub.f32 %v56, %v276
    %278 = vmatpush1.msra.mxu0 %v277
    %279 = vmatprep.subr.mxu0 0.0
    %v280 = vand.u32 %v57, 4294901760
    %v281 = vsub.f32 %v57, %v280
    %282 = vmatpush1.msra.mxu0 %v281
    %283 = vmatprep.subr.mxu0 0.0
    %v284 = vand.u32 %v58, 4294901760
    %v285 = vsub.f32 %v58, %v284
    %286 = vmatpush1.msra.mxu0 %v285
    %287 = vmatprep.subr.mxu0 0.0
    %v288 = vand.u32 %v59, 4294901760
    %v289 = vsub.f32 %v59, %v288
    %290 = vmatpush1.msra.mxu0 %v289
    %291 = vmatprep.subr.mxu0 0.0
    %292 = vmatpush1.msra.mxu0 0.0
    %293 = vmatprep.subr.mxu0 0.0
    %294 = vmatpush1.msra.mxu0 0.0
    %295 = vmatprep.subr.mxu0 0.0
    %296 = vmatpush1.msra.mxu0 0.0
    %297 = vmatprep.subr.mxu0 0.0
    %298 = vmatpush1.msra.mxu0 0.0
    %299 = vmatprep.subr.mxu0 0.0
    %300 = vmatpush1.msra.mxu0 0.0
    %301 = vmatprep.subr.mxu0 0.0
    %302 = vmatpush1.msra.mxu0 0.0
    %303 = vmatprep.subr.mxu0 0.0
    %304 = vmatpush1.msra.mxu0 0.0
    %305 = vmatprep.subr.mxu0 0.0
    %306 = vmatpush1.msra.mxu0 0.0
    %307 = vmatprep.subr.mxu0 0.0
    %308 = vmatpush1.msra.mxu0 0.0
    %309 = vmatprep.subr.mxu0 0.0
    %310 = vmatpush1.msra.mxu0 0.0
    %311 = vmatprep.subr.mxu0 0.0
    %312 = vmatpush1.msra.mxu0 0.0
    %313 = vmatprep.subr.mxu0 0.0
    %314 = vmatpush1.msra.mxu0 0.0
    %315 = vmatprep.subr.mxu0 0.0
    %316 = vmatpush1.msra.mxu0 0.0
    %317 = vmatprep.subr.mxu0 0.0
    %318 = vmatpush1.msra.mxu0 0.0
    %319 = vmatprep.subr.mxu0 0.0
    %320 = vmatpush1.msra.mxu0 0.0
    %321 = vmatprep.subr.mxu0 0.0
    %322 = vmatpush1.msra.mxu0 0.0
    %323 = vmatprep.subr.mxu0 0.0
    %324 = vmatpush1.msra.mxu0 0.0
    %325 = vmatprep.subr.mxu0 0.0
    %326 = vmatpush1.msra.mxu0 0.0
    %327 = vmatprep.subr.mxu0 0.0
    %328 = vmatpush1.msra.mxu0 0.0
    %329 = vmatprep.subr.mxu0 0.0
    %330 = vmatpush1.msra.mxu0 0.0
    %331 = vmatprep.subr.mxu0 0.0
    %332 = vmatpush1.msra.mxu0 0.0
    %333 = vmatprep.subr.mxu0 0.0
    %334 = vmatpush1.msra.mxu0 0.0
    %335 = vmatprep.subr.mxu0 0.0
    %336 = vmatpush1.msra.mxu0 0.0
    %337 = vmatprep.subr.mxu0 0.0
    %338 = vmatpush1.msra.mxu0 0.0
    %339 = vmatprep.mubr.f32.mxu0 0.0
    %v340 = vand.u32 %v63, 4294901760
    %v341 = vsub.f32 %v63, %v340
    %342 = vmatmul.mubr.f32.gmra.mrb[0].mxu0 %v341
    %v343 = vpop.f32.mrb[0].mxu0
    %v344 = vadd.f32 %v256, %v343
    %v345 = vpop.f32.mrb[0].mxu0
    %346 = vdwg.mxu0
    %347 = vmatprep.subr.mxu0 0.0
    %v348 = vand.u32 %v52, 4294901760
    %349 = vmatpush1.msra.mxu0 %v348
    %350 = vmatprep.subr.mxu0 0.0
    %v351 = vand.u32 %v53, 4294901760
    %352 = vmatpush1.msra.mxu0 %v351
    %353 = vmatprep.subr.mxu0 0.0
    %v354 = vand.u32 %v54, 4294901760
    %355 = vmatpush1.msra.mxu0 %v354
    %356 = vmatprep.subr.mxu0 0.0
    %v357 = vand.u32 %v55, 4294901760
    %358 = vmatpush1.msra.mxu0 %v357
    %359 = vmatprep.subr.mxu0 0.0
    %v360 = vand.u32 %v56, 4294901760
    %361 = vmatpush1.msra.mxu0 %v360
    %362 = vmatprep.subr.mxu0 0.0
    %v363 = vand.u32 %v57, 4294901760
    %364 = vmatpush1.msra.mxu0 %v363
    %365 = vmatprep.subr.mxu0 0.0
    %v366 = vand.u32 %v58, 4294901760
    %367 = vmatpush1.msra.mxu0 %v366
    %368 = vmatprep.subr.mxu0 0.0
    %v369 = vand.u32 %v59, 4294901760
    %370 = vmatpush1.msra.mxu0 %v369
    %371 = vmatprep.subr.mxu0 0.0
    %372 = vmatpush1.msra.mxu0 0.0
    %373 = vmatprep.subr.mxu0 0.0
    %374 = vmatpush1.msra.mxu0 0.0
    %375 = vmatprep.subr.mxu0 0.0
    %376 = vmatpush1.msra.mxu0 0.0
    %377 = vmatprep.subr.mxu0 0.0
    %378 = vmatpush1.msra.mxu0 0.0
    %379 = vmatprep.subr.mxu0 0.0
    %380 = vmatpush1.msra.mxu0 0.0
    %381 = vmatprep.subr.mxu0 0.0
    %382 = vmatpush1.msra.mxu0 0.0
    %383 = vmatprep.subr.mxu0 0.0
    %384 = vmatpush1.msra.mxu0 0.0
    %385 = vmatprep.subr.mxu0 0.0
    %386 = vmatpush1.msra.mxu0 0.0
    %387 = vmatprep.subr.mxu0 0.0
    %388 = vmatpush1.msra.mxu0 0.0
    %389 = vmatprep.subr.mxu0 0.0
    %390 = vmatpush1.msra.mxu0 0.0
    %391 = vmatprep.subr.mxu0 0.0
    %392 = vmatpush1.msra.mxu0 0.0
    %393 = vmatprep.subr.mxu0 0.0
    %394 = vmatpush1.msra.mxu0 0.0
    %395 = vmatprep.subr.mxu0 0.0
    %396 = vmatpush1.msra.mxu0 0.0
    %397 = vmatprep.subr.mxu0 0.0
    %398 = vmatpush1.msra.mxu0 0.0
    %399 = vmatprep.subr.mxu0 0.0
    %400 = vmatpush1.msra.mxu0 0.0
    %401 = vmatprep.subr.mxu0 0.0
    %402 = vmatpush1.msra.mxu0 0.0
    %403 = vmatprep.subr.mxu0 0.0
    %404 = vmatpush1.msra.mxu0 0.0
    %405 = vmatprep.subr.mxu0 0.0
    %406 = vmatpush1.msra.mxu0 0.0
    %407 = vmatprep.subr.mxu0 0.0
    %408 = vmatpush1.msra.mxu0 0.0
    %409 = vmatprep.subr.mxu0 0.0
    %410 = vmatpush1.msra.mxu0 0.0
    %411 = vmatprep.subr.mxu0 0.0
    %412 = vmatpush1.msra.mxu0 0.0
    %413 = vmatprep.subr.mxu0 0.0
    %414 = vmatpush1.msra.mxu0 0.0
    %415 = vmatprep.subr.mxu0 0.0
    %416 = vmatpush1.msra.mxu0 0.0
    %417 = vmatprep.subr.mxu0 0.0
    %418 = vmatpush1.msra.mxu0 0.0
    %419 = vmatprep.mubr.f32.mxu0 0.0
    %v420 = vand.u32 %v63, 4294901760
    %v421 = vsub.f32 %v63, %v420
    %v422 = vand.u32 %v421, 4294901760
    %423 = vmatmul.mubr.f32.gmra.mrb[0].mxu0 %v422
    %v424 = vpop.f32.mrb[0].mxu0
    %v425 = vadd.f32 %v344, %v424
    %v426 = vpop.f32.mrb[0].mxu0
    %427 = vdwg.mxu0
    %428 = vmatprep.subr.mxu0 0.0
    %v429 = vand.u32 %v52, 4294901760
    %v430 = vsub.f32 %v52, %v429
    %v431 = vand.u32 %v430, 4294901760
    %432 = vmatpush1.msra.mxu0 %v431
    %433 = vmatprep.subr.mxu0 0.0
    %v434 = vand.u32 %v53, 4294901760
    %v435 = vsub.f32 %v53, %v434
    %v436 = vand.u32 %v435, 4294901760
    %437 = vmatpush1.msra.mxu0 %v436
    %438 = vmatprep.subr.mxu0 0.0
    %v439 = vand.u32 %v54, 4294901760
    %v440 = vsub.f32 %v54, %v439
    %v441 = vand.u32 %v440, 4294901760
    %442 = vmatpush1.msra.mxu0 %v441
    %443 = vmatprep.subr.mxu0 0.0
    %v444 = vand.u32 %v55, 4294901760
    %v445 = vsub.f32 %v55, %v444
    %v446 = vand.u32 %v445, 4294901760
    %447 = vmatpush1.msra.mxu0 %v446
    %448 = vmatprep.subr.mxu0 0.0
    %v449 = vand.u32 %v56, 4294901760
    %v450 = vsub.f32 %v56, %v449
    %v451 = vand.u32 %v450, 4294901760
    %452 = vmatpush1.msra.mxu0 %v451
    %453 = vmatprep.subr.mxu0 0.0
    %v454 = vand.u32 %v57, 4294901760
    %v455 = vsub.f32 %v57, %v454
    %v456 = vand.u32 %v455, 4294901760
    %457 = vmatpush1.msra.mxu0 %v456
    %458 = vmatprep.subr.mxu0 0.0
    %v459 = vand.u32 %v58, 4294901760
    %v460 = vsub.f32 %v58, %v459
    %v461 = vand.u32 %v460, 4294901760
    %462 = vmatpush1.msra.mxu0 %v461
    %463 = vmatprep.subr.mxu0 0.0
    %v464 = vand.u32 %v59, 4294901760
    %v465 = vsub.f32 %v59, %v464
    %v466 = vand.u32 %v465, 4294901760
    %467 = vmatpush1.msra.mxu0 %v466
    %468 = vmatprep.subr.mxu0 0.0
    %469 = vmatpush1.msra.mxu0 0.0
    %470 = vmatprep.subr.mxu0 0.0
    %471 = vmatpush1.msra.mxu0 0.0
    %472 = vmatprep.subr.mxu0 0.0
    %473 = vmatpush1.msra.mxu0 0.0
    %474 = vmatprep.subr.mxu0 0.0
    %475 = vmatpush1.msra.mxu0 0.0
    %476 = vmatprep.subr.mxu0 0.0
    %477 = vmatpush1.msra.mxu0 0.0
    %478 = vmatprep.subr.mxu0 0.0
    %479 = vmatpush1.msra.mxu0 0.0
    %480 = vmatprep.subr.mxu0 0.0
    %481 = vmatpush1.msra.mxu0 0.0
    %482 = vmatprep.subr.mxu0 0.0
    %483 = vmatpush1.msra.mxu0 0.0
    %484 = vmatprep.subr.mxu0 0.0
    %485 = vmatpush1.msra.mxu0 0.0
    %486 = vmatprep.subr.mxu0 0.0
    %487 = vmatpush1.msra.mxu0 0.0
    %488 = vmatprep.subr.mxu0 0.0
    %489 = vmatpush1.msra.mxu0 0.0
    %490 = vmatprep.subr.mxu0 0.0
    %491 = vmatpush1.msra.mxu0 0.0
    %492 = vmatprep.subr.mxu0 0.0
    %493 = vmatpush1.msra.mxu0 0.0
    %494 = vmatprep.subr.mxu0 0.0
    %495 = vmatpush1.msra.mxu0 0.0
    %496 = vmatprep.subr.mxu0 0.0
    %497 = vmatpush1.msra.mxu0 0.0
    %498 = vmatprep.subr.mxu0 0.0
    %499 = vmatpush1.msra.mxu0 0.0
    %500 = vmatprep.subr.mxu0 0.0
    %501 = vmatpush1.msra.mxu0 0.0
    %502 = vmatprep.subr.mxu0 0.0
    %503 = vmatpush1.msra.mxu0 0.0
    %504 = vmatprep.subr.mxu0 0.0
    %505 = vmatpush1.msra.mxu0 0.0
    %506 = vmatprep.subr.mxu0 0.0
    %507 = vmatpush1.msra.mxu0 0.0
    %508 = vmatprep.subr.mxu0 0.0
    %509 = vmatpush1.msra.mxu0 0.0
    %510 = vmatprep.subr.mxu0 0.0
    %511 = vmatpush1.msra.mxu0 0.0
    %512 = vmatprep.subr.mxu0 0.0
    %513 = vmatpush1.msra.mxu0 0.0
    %514 = vmatprep.subr.mxu0 0.0
    %515 = vmatpush1.msra.mxu0 0.0
    %516 = vmatprep.mubr.f32.mxu0 0.0
    %v517 = vand.u32 %v63, 4294901760
    %518 = vmatmul.mubr.f32.gmra.mrb[0].mxu0 %v517
    %v519 = vpop.f32.mrb[0].mxu0
    %v520 = vadd.f32 %v425, %v519
    %v521 = vpop.f32.mrb[0].mxu0
    %522 = vdwg.mxu0
    %523 = vmatprep.subr.mxu0 0.0
    %v524 = vand.u32 %v52, 4294901760
    %525 = vmatpush1.msra.mxu0 %v524
    %526 = vmatprep.subr.mxu0 0.0
    %v527 = vand.u32 %v53, 4294901760
    %528 = vmatpush1.msra.mxu0 %v527
    %529 = vmatprep.subr.mxu0 0.0
    %v530 = vand.u32 %v54, 4294901760
    %531 = vmatpush1.msra.mxu0 %v530
    %532 = vmatprep.subr.mxu0 0.0
    %v533 = vand.u32 %v55, 4294901760
    %534 = vmatpush1.msra.mxu0 %v533
    %535 = vmatprep.subr.mxu0 0.0
    %v536 = vand.u32 %v56, 4294901760
    %537 = vmatpush1.msra.mxu0 %v536
    %538 = vmatprep.subr.mxu0 0.0
    %v539 = vand.u32 %v57, 4294901760
    %540 = vmatpush1.msra.mxu0 %v539
    %541 = vmatprep.subr.mxu0 0.0
    %v542 = vand.u32 %v58, 4294901760
    %543 = vmatpush1.msra.mxu0 %v542
    %544 = vmatprep.subr.mxu0 0.0
    %v545 = vand.u32 %v59, 4294901760
    %546 = vmatpush1.msra.mxu0 %v545
    %547 = vmatprep.subr.mxu0 0.0
    %548 = vmatpush1.msra.mxu0 0.0
    %549 = vmatprep.subr.mxu0 0.0
    %550 = vmatpush1.msra.mxu0 0.0
    %551 = vmatprep.subr.mxu0 0.0
    %552 = vmatpush1.msra.mxu0 0.0
    %553 = vmatprep.subr.mxu0 0.0
    %554 = vmatpush1.msra.mxu0 0.0
    %555 = vmatprep.subr.mxu0 0.0
    %556 = vmatpush1.msra.mxu0 0.0
    %557 = vmatprep.subr.mxu0 0.0
    %558 = vmatpush1.msra.mxu0 0.0
    %559 = vmatprep.subr.mxu0 0.0
    %560 = vmatpush1.msra.mxu0 0.0
    %561 = vmatprep.subr.mxu0 0.0
    %562 = vmatpush1.msra.mxu0 0.0
    %563 = vmatprep.subr.mxu0 0.0
    %564 = vmatpush1.msra.mxu0 0.0
    %565 = vmatprep.subr.mxu0 0.0
    %566 = vmatpush1.msra.mxu0 0.0
    %567 = vmatprep.subr.mxu0 0.0
    %568 = vmatpush1.msra.mxu0 0.0
    %569 = vmatprep.subr.mxu0 0.0
    %570 = vmatpush1.msra.mxu0 0.0
    %571 = vmatprep.subr.mxu0 0.0
    %572 = vmatpush1.msra.mxu0 0.0
    %573 = vmatprep.subr.mxu0 0.0
    %574 = vmatpush1.msra.mxu0 0.0
    %575 = vmatprep.subr.mxu0 0.0
    %576 = vmatpush1.msra.mxu0 0.0
    %577 = vmatprep.subr.mxu0 0.0
    %578 = vmatpush1.msra.mxu0 0.0
    %579 = vmatprep.subr.mxu0 0.0
    %580 = vmatpush1.msra.mxu0 0.0
    %581 = vmatprep.subr.mxu0 0.0
    %582 = vmatpush1.msra.mxu0 0.0
    %583 = vmatprep.subr.mxu0 0.0
    %584 = vmatpush1.msra.mxu0 0.0
    %585 = vmatprep.subr.mxu0 0.0
    %586 = vmatpush1.msra.mxu0 0.0
    %587 = vmatprep.subr.mxu0 0.0
    %588 = vmatpush1.msra.mxu0 0.0
    %589 = vmatprep.subr.mxu0 0.0
    %590 = vmatpush1.msra.mxu0 0.0
    %591 = vmatprep.subr.mxu0 0.0
    %592 = vmatpush1.msra.mxu0 0.0
    %593 = vmatprep.subr.mxu0 0.0
    %594 = vmatpush1.msra.mxu0 0.0
    %595 = vmatprep.mubr.f32.mxu0 0.0
    %v596 = vand.u32 %v63, 4294901760
    %597 = vmatmul.mubr.f32.gmra.mrb[0].mxu0 %v596
    %v598 = vpop.f32.mrb[0].mxu0
    %v599 = vadd.f32 %v520, %v598
    %v600 = vpop.f32.mrb[0].mxu0
    %601 = vdwg.mxu0
    %v602 = vmul.f32 %v52, %v52
    %v603 = vmul.f32 %v53, %v53
    %v604 = vmul.f32 %v54, %v54
    %v605 = vmul.f32 %v55, %v55
    %v606 = vmul.f32 %v56, %v56
    %v607 = vmul.f32 %v57, %v57
    %v608 = vmul.f32 %v58, %v58
    %v609 = vmul.f32 %v59, %v59
    %610 = vmatprep.subr.mxu0 0.0
    %v611 = vand.u32 %v602, 4294901760
    %612 = vmatpush1.msra.mxu0 %v611
    %613 = vmatprep.subr.mxu0 0.0
    %v614 = vand.u32 %v603, 4294901760
    %615 = vmatpush1.msra.mxu0 %v614
    %616 = vmatprep.subr.mxu0 0.0
    %v617 = vand.u32 %v604, 4294901760
    %618 = vmatpush1.msra.mxu0 %v617
    %619 = vmatprep.subr.mxu0 0.0
    %v620 = vand.u32 %v605, 4294901760
    %621 = vmatpush1.msra.mxu0 %v620
    %622 = vmatprep.subr.mxu0 0.0
    %v623 = vand.u32 %v606, 4294901760
    %624 = vmatpush1.msra.mxu0 %v623
    %625 = vmatprep.subr.mxu0 0.0
    %v626 = vand.u32 %v607, 4294901760
    %627 = vmatpush1.msra.mxu0 %v626
    %628 = vmatprep.subr.mxu0 0.0
    %v629 = vand.u32 %v608, 4294901760
    %630 = vmatpush1.msra.mxu0 %v629
    %631 = vmatprep.subr.mxu0 0.0
    %v632 = vand.u32 %v609, 4294901760
    %633 = vmatpush1.msra.mxu0 %v632
    %634 = vmatprep.subr.mxu0 0.0
    %635 = vmatpush1.msra.mxu0 0.0
    %636 = vmatprep.subr.mxu0 0.0
    %637 = vmatpush1.msra.mxu0 0.0
    %638 = vmatprep.subr.mxu0 0.0
    %639 = vmatpush1.msra.mxu0 0.0
    %640 = vmatprep.subr.mxu0 0.0
    %641 = vmatpush1.msra.mxu0 0.0
    %642 = vmatprep.subr.mxu0 0.0
    %643 = vmatpush1.msra.mxu0 0.0
    %644 = vmatprep.subr.mxu0 0.0
    %645 = vmatpush1.msra.mxu0 0.0
    %646 = vmatprep.subr.mxu0 0.0
    %647 = vmatpush1.msra.mxu0 0.0
    %648 = vmatprep.subr.mxu0 0.0
    %649 = vmatpush1.msra.mxu0 0.0
    %650 = vmatprep.subr.mxu0 0.0
    %651 = vmatpush1.msra.mxu0 0.0
    %652 = vmatprep.subr.mxu0 0.0
    %653 = vmatpush1.msra.mxu0 0.0
    %654 = vmatprep.subr.mxu0 0.0
    %655 = vmatpush1.msra.mxu0 0.0
    %656 = vmatprep.subr.mxu0 0.0
    %657 = vmatpush1.msra.mxu0 0.0
    %658 = vmatprep.subr.mxu0 0.0
    %659 = vmatpush1.msra.mxu0 0.0
    %660 = vmatprep.subr.mxu0 0.0
    %661 = vmatpush1.msra.mxu0 0.0
    %662 = vmatprep.subr.mxu0 0.0
    %663 = vmatpush1.msra.mxu0 0.0
    %664 = vmatprep.subr.mxu0 0.0
    %665 = vmatpush1.msra.mxu0 0.0
    %666 = vmatprep.subr.mxu0 0.0
    %667 = vmatpush1.msra.mxu0 0.0
    %668 = vmatprep.subr.mxu0 0.0
    %669 = vmatpush1.msra.mxu0 0.0
    %670 = vmatprep.subr.mxu0 0.0
    %671 = vmatpush1.msra.mxu0 0.0
    %672 = vmatprep.subr.mxu0 0.0
    %673 = vmatpush1.msra.mxu0 0.0
    %674 = vmatprep.subr.mxu0 0.0
    %675 = vmatpush1.msra.mxu0 0.0
    %676 = vmatprep.subr.mxu0 0.0
    %677 = vmatpush1.msra.mxu0 0.0
    %678 = vmatprep.subr.mxu0 0.0
    %679 = vmatpush1.msra.mxu0 0.0
    %680 = vmatprep.subr.mxu0 0.0
    %681 = vmatpush1.msra.mxu0 0.0
    %682 = vmatprep.mubr.f32.mxu0 0.0
    %v683 = vand.u32 %v63, 4294901760
    %v684 = vsub.f32 %v63, %v683
    %v685 = vand.u32 %v684, 4294901760
    %v686 = vsub.f32 %v684, %v685
    %v687 = vand.u32 %v686, 4294901760
    %688 = vmatmul.mubr.f32.gmra.mrb[0].mxu0 %v687
    %v689 = vpop.f32.mrb[0].mxu0
    %v690 = vadd.f32 0.0, %v689
    %v691 = vpop.f32.mrb[0].mxu0
    %692 = vdwg.mxu0
    %693 = vmatprep.subr.mxu0 0.0
    %v694 = vand.u32 %v602, 4294901760
    %v695 = vsub.f32 %v602, %v694
    %v696 = vand.u32 %v695, 4294901760
    %v697 = vsub.f32 %v695, %v696
    %v698 = vand.u32 %v697, 4294901760
    %699 = vmatpush1.msra.mxu0 %v698
    %700 = vmatprep.subr.mxu0 0.0
    %v701 = vand.u32 %v603, 4294901760
    %v702 = vsub.f32 %v603, %v701
    %v703 = vand.u32 %v702, 4294901760
    %v704 = vsub.f32 %v702, %v703
    %v705 = vand.u32 %v704, 4294901760
    %706 = vmatpush1.msra.mxu0 %v705
    %707 = vmatprep.subr.mxu0 0.0
    %v708 = vand.u32 %v604, 4294901760
    %v709 = vsub.f32 %v604, %v708
    %v710 = vand.u32 %v709, 4294901760
    %v711 = vsub.f32 %v709, %v710
    %v712 = vand.u32 %v711, 4294901760
    %713 = vmatpush1.msra.mxu0 %v712
    %714 = vmatprep.subr.mxu0 0.0
    %v715 = vand.u32 %v605, 4294901760
    %v716 = vsub.f32 %v605, %v715
    %v717 = vand.u32 %v716, 4294901760
    %v718 = vsub.f32 %v716, %v717
    %v719 = vand.u32 %v718, 4294901760
    %720 = vmatpush1.msra.mxu0 %v719
    %721 = vmatprep.subr.mxu0 0.0
    %v722 = vand.u32 %v606, 4294901760
    %v723 = vsub.f32 %v606, %v722
    %v724 = vand.u32 %v723, 4294901760
    %v725 = vsub.f32 %v723, %v724
    %v726 = vand.u32 %v725, 4294901760
    %727 = vmatpush1.msra.mxu0 %v726
    %728 = vmatprep.subr.mxu0 0.0
    %v729 = vand.u32 %v607, 4294901760
    %v730 = vsub.f32 %v607, %v729
    %v731 = vand.u32 %v730, 4294901760
    %v732 = vsub.f32 %v730, %v731
    %v733 = vand.u32 %v732, 4294901760
    %734 = vmatpush1.msra.mxu0 %v733
    %735 = vmatprep.subr.mxu0 0.0
    %v736 = vand.u32 %v608, 4294901760
    %v737 = vsub.f32 %v608, %v736
    %v738 = vand.u32 %v737, 4294901760
    %v739 = vsub.f32 %v737, %v738
    %v740 = vand.u32 %v739, 4294901760
    %741 = vmatpush1.msra.mxu0 %v740
    %742 = vmatprep.subr.mxu0 0.0
    %v743 = vand.u32 %v609, 4294901760
    %v744 = vsub.f32 %v609, %v743
    %v745 = vand.u32 %v744, 4294901760
    %v746 = vsub.f32 %v744, %v745
    %v747 = vand.u32 %v746, 4294901760
    %748 = vmatpush1.msra.mxu0 %v747
    %749 = vmatprep.subr.mxu0 0.0
    %750 = vmatpush1.msra.mxu0 0.0
    %751 = vmatprep.subr.mxu0 0.0
    %752 = vmatpush1.msra.mxu0 0.0
    %753 = vmatprep.subr.mxu0 0.0
    %754 = vmatpush1.msra.mxu0 0.0
    %755 = vmatprep.subr.mxu0 0.0
    %756 = vmatpush1.msra.mxu0 0.0
    %757 = vmatprep.subr.mxu0 0.0
    %758 = vmatpush1.msra.mxu0 0.0
    %759 = vmatprep.subr.mxu0 0.0
    %760 = vmatpush1.msra.mxu0 0.0
    %761 = vmatprep.subr.mxu0 0.0
    %762 = vmatpush1.msra.mxu0 0.0
    %763 = vmatprep.subr.mxu0 0.0
    %764 = vmatpush1.msra.mxu0 0.0
    %765 = vmatprep.subr.mxu0 0.0
    %766 = vmatpush1.msra.mxu0 0.0
    %767 = vmatprep.subr.mxu0 0.0
    %768 = vmatpush1.msra.mxu0 0.0
    %769 = vmatprep.subr.mxu0 0.0
    %770 = vmatpush1.msra.mxu0 0.0
    %771 = vmatprep.subr.mxu0 0.0
    %772 = vmatpush1.msra.mxu0 0.0
    %773 = vmatprep.subr.mxu0 0.0
    %774 = vmatpush1.msra.mxu0 0.0
    %775 = vmatprep.subr.mxu0 0.0
    %776 = vmatpush1.msra.mxu0 0.0
    %777 = vmatprep.subr.mxu0 0.0
    %778 = vmatpush1.msra.mxu0 0.0
    %779 = vmatprep.subr.mxu0 0.0
    %780 = vmatpush1.msra.mxu0 0.0
    %781 = vmatprep.subr.mxu0 0.0
    %782 = vmatpush1.msra.mxu0 0.0
    %783 = vmatprep.subr.mxu0 0.0
    %784 = vmatpush1.msra.mxu0 0.0
    %785 = vmatprep.subr.mxu0 0.0
    %786 = vmatpush1.msra.mxu0 0.0
    %787 = vmatprep.subr.mxu0 0.0
    %788 = vmatpush1.msra.mxu0 0.0
    %789 = vmatprep.subr.mxu0 0.0
    %790 = vmatpush1.msra.mxu0 0.0
    %791 = vmatprep.subr.mxu0 0.0
    %792 = vmatpush1.msra.mxu0 0.0
    %793 = vmatprep.subr.mxu0 0.0
    %794 = vmatpush1.msra.mxu0 0.0
    %795 = vmatprep.subr.mxu0 0.0
    %796 = vmatpush1.msra.mxu0 0.0
    %797 = vmatprep.mubr.f32.mxu0 0.0
    %v798 = vand.u32 %v63, 4294901760
    %799 = vmatmul.mubr.f32.gmra.mrb[0].mxu0 %v798
    %v800 = vpop.f32.mrb[0].mxu0
    %v801 = vadd.f32 %v690, %v800
    %v802 = vpop.f32.mrb[0].mxu0
    %803 = vdwg.mxu0
    %804 = vmatprep.subr.mxu0 0.0
    %v805 = vand.u32 %v602, 4294901760
    %v806 = vsub.f32 %v602, %v805
    %807 = vmatpush1.msra.mxu0 %v806
    %808 = vmatprep.subr.mxu0 0.0
    %v809 = vand.u32 %v603, 4294901760
    %v810 = vsub.f32 %v603, %v809
    %811 = vmatpush1.msra.mxu0 %v810
    %812 = vmatprep.subr.mxu0 0.0
    %v813 = vand.u32 %v604, 4294901760
    %v814 = vsub.f32 %v604, %v813
    %815 = vmatpush1.msra.mxu0 %v814
    %816 = vmatprep.subr.mxu0 0.0
    %v817 = vand.u32 %v605, 4294901760
    %v818 = vsub.f32 %v605, %v817
    %819 = vmatpush1.msra.mxu0 %v818
    %820 = vmatprep.subr.mxu0 0.0
    %v821 = vand.u32 %v606, 4294901760
    %v822 = vsub.f32 %v606, %v821
    %823 = vmatpush1.msra.mxu0 %v822
    %824 = vmatprep.subr.mxu0 0.0
    %v825 = vand.u32 %v607, 4294901760
    %v826 = vsub.f32 %v607, %v825
    %827 = vmatpush1.msra.mxu0 %v826
    %828 = vmatprep.subr.mxu0 0.0
    %v829 = vand.u32 %v608, 4294901760
    %v830 = vsub.f32 %v608, %v829
    %831 = vmatpush1.msra.mxu0 %v830
    %832 = vmatprep.subr.mxu0 0.0
    %v833 = vand.u32 %v609, 4294901760
    %v834 = vsub.f32 %v609, %v833
    %835 = vmatpush1.msra.mxu0 %v834
    %836 = vmatprep.subr.mxu0 0.0
    %837 = vmatpush1.msra.mxu0 0.0
    %838 = vmatprep.subr.mxu0 0.0
    %839 = vmatpush1.msra.mxu0 0.0
    %840 = vmatprep.subr.mxu0 0.0
    %841 = vmatpush1.msra.mxu0 0.0
    %842 = vmatprep.subr.mxu0 0.0
    %843 = vmatpush1.msra.mxu0 0.0
    %844 = vmatprep.subr.mxu0 0.0
    %845 = vmatpush1.msra.mxu0 0.0
    %846 = vmatprep.subr.mxu0 0.0
    %847 = vmatpush1.msra.mxu0 0.0
    %848 = vmatprep.subr.mxu0 0.0
    %849 = vmatpush1.msra.mxu0 0.0
    %850 = vmatprep.subr.mxu0 0.0
    %851 = vmatpush1.msra.mxu0 0.0
    %852 = vmatprep.subr.mxu0 0.0
    %853 = vmatpush1.msra.mxu0 0.0
    %854 = vmatprep.subr.mxu0 0.0
    %855 = vmatpush1.msra.mxu0 0.0
    %856 = vmatprep.subr.mxu0 0.0
    %857 = vmatpush1.msra.mxu0 0.0
    %858 = vmatprep.subr.mxu0 0.0
    %859 = vmatpush1.msra.mxu0 0.0
    %860 = vmatprep.subr.mxu0 0.0
    %861 = vmatpush1.msra.mxu0 0.0
    %862 = vmatprep.subr.mxu0 0.0
    %863 = vmatpush1.msra.mxu0 0.0
    %864 = vmatprep.subr.mxu0 0.0
    %865 = vmatpush1.msra.mxu0 0.0
    %866 = vmatprep.subr.mxu0 0.0
    %867 = vmatpush1.msra.mxu0 0.0
    %868 = vmatprep.subr.mxu0 0.0
    %869 = vmatpush1.msra.mxu0 0.0
    %870 = vmatprep.subr.mxu0 0.0
    %871 = vmatpush1.msra.mxu0 0.0
    %872 = vmatprep.subr.mxu0 0.0
    %873 = vmatpush1.msra.mxu0 0.0
    %874 = vmatprep.subr.mxu0 0.0
    %875 = vmatpush1.msra.mxu0 0.0
    %876 = vmatprep.subr.mxu0 0.0
    %877 = vmatpush1.msra.mxu0 0.0
    %878 = vmatprep.subr.mxu0 0.0
    %879 = vmatpush1.msra.mxu0 0.0
    %880 = vmatprep.subr.mxu0 0.0
    %881 = vmatpush1.msra.mxu0 0.0
    %882 = vmatprep.subr.mxu0 0.0
    %883 = vmatpush1.msra.mxu0 0.0
    %884 = vmatprep.mubr.f32.mxu0 0.0
    %v885 = vand.u32 %v63, 4294901760
    %v886 = vsub.f32 %v63, %v885
    %887 = vmatmul.mubr.f32.gmra.mrb[0].mxu0 %v886
    %v888 = vpop.f32.mrb[0].mxu0
    %v889 = vadd.f32 %v801, %v888
    %v890 = vpop.f32.mrb[0].mxu0
    %891 = vdwg.mxu0
    %892 = vmatprep.subr.mxu0 0.0
    %v893 = vand.u32 %v602, 4294901760
    %894 = vmatpush1.msra.mxu0 %v893
    %895 = vmatprep.subr.mxu0 0.0
    %v896 = vand.u32 %v603, 4294901760
    %897 = vmatpush1.msra.mxu0 %v896
    %898 = vmatprep.subr.mxu0 0.0
    %v899 = vand.u32 %v604, 4294901760
    %900 = vmatpush1.msra.mxu0 %v899
    %901 = vmatprep.subr.mxu0 0.0
    %v902 = vand.u32 %v605, 4294901760
    %903 = vmatpush1.msra.mxu0 %v902
    %904 = vmatprep.subr.mxu0 0.0
    %v905 = vand.u32 %v606, 4294901760
    %906 = vmatpush1.msra.mxu0 %v905
    %907 = vmatprep.subr.mxu0 0.0
    %v908 = vand.u32 %v607, 4294901760
    %909 = vmatpush1.msra.mxu0 %v908
    %910 = vmatprep.subr.mxu0 0.0
    %v911 = vand.u32 %v608, 4294901760
    %912 = vmatpush1.msra.mxu0 %v911
    %913 = vmatprep.subr.mxu0 0.0
    %v914 = vand.u32 %v609, 4294901760
    %915 = vmatpush1.msra.mxu0 %v914
    %916 = vmatprep.subr.mxu0 0.0
    %917 = vmatpush1.msra.mxu0 0.0
    %918 = vmatprep.subr.mxu0 0.0
    %919 = vmatpush1.msra.mxu0 0.0
    %920 = vmatprep.subr.mxu0 0.0
    %921 = vmatpush1.msra.mxu0 0.0
    %922 = vmatprep.subr.mxu0 0.0
    %923 = vmatpush1.msra.mxu0 0.0
    %924 = vmatprep.subr.mxu0 0.0
    %925 = vmatpush1.msra.mxu0 0.0
    %926 = vmatprep.subr.mxu0 0.0
    %927 = vmatpush1.msra.mxu0 0.0
    %928 = vmatprep.subr.mxu0 0.0
    %929 = vmatpush1.msra.mxu0 0.0
    %930 = vmatprep.subr.mxu0 0.0
    %931 = vmatpush1.msra.mxu0 0.0
    %932 = vmatprep.subr.mxu0 0.0
    %933 = vmatpush1.msra.mxu0 0.0
    %934 = vmatprep.subr.mxu0 0.0
    %935 = vmatpush1.msra.mxu0 0.0
    %936 = vmatprep.subr.mxu0 0.0
    %937 = vmatpush1.msra.mxu0 0.0
    %938 = vmatprep.subr.mxu0 0.0
    %939 = vmatpush1.msra.mxu0 0.0
    %940 = vmatprep.subr.mxu0 0.0
    %941 = vmatpush1.msra.mxu0 0.0
    %942 = vmatprep.subr.mxu0 0.0
    %943 = vmatpush1.msra.mxu0 0.0
    %944 = vmatprep.subr.mxu0 0.0
    %945 = vmatpush1.msra.mxu0 0.0
    %946 = vmatprep.subr.mxu0 0.0
    %947 = vmatpush1.msra.mxu0 0.0
    %948 = vmatprep.subr.mxu0 0.0
    %949 = vmatpush1.msra.mxu0 0.0
    %950 = vmatprep.subr.mxu0 0.0
    %951 = vmatpush1.msra.mxu0 0.0
    %952 = vmatprep.subr.mxu0 0.0
    %953 = vmatpush1.msra.mxu0 0.0
    %954 = vmatprep.subr.mxu0 0.0
    %955 = vmatpush1.msra.mxu0 0.0
    %956 = vmatprep.subr.mxu0 0.0
    %957 = vmatpush1.msra.mxu0 0.0
    %958 = vmatprep.subr.mxu0 0.0
    %959 = vmatpush1.msra.mxu0 0.0
    %960 = vmatprep.subr.mxu0 0.0
    %961 = vmatpush1.msra.mxu0 0.0
    %962 = vmatprep.subr.mxu0 0.0
    %963 = vmatpush1.msra.mxu0 0.0
    %964 = vmatprep.mubr.f32.mxu0 0.0
    %v965 = vand.u32 %v63, 4294901760
    %v966 = vsub.f32 %v63, %v965
    %v967 = vand.u32 %v966, 4294901760
    %968 = vmatmul.mubr.f32.gmra.mrb[0].mxu0 %v967
    %v969 = vpop.f32.mrb[0].mxu0
    %v970 = vadd.f32 %v889, %v969
    %v971 = vpop.f32.mrb[0].mxu0
    %972 = vdwg.mxu0
    %973 = vmatprep.subr.mxu0 0.0
    %v974 = vand.u32 %v602, 4294901760
    %v975 = vsub.f32 %v602, %v974
    %v976 = vand.u32 %v975, 4294901760
    %977 = vmatpush1.msra.mxu0 %v976
    %978 = vmatprep.subr.mxu0 0.0
    %v979 = vand.u32 %v603, 4294901760
    %v980 = vsub.f32 %v603, %v979
    %v981 = vand.u32 %v980, 4294901760
    %982 = vmatpush1.msra.mxu0 %v981
    %983 = vmatprep.subr.mxu0 0.0
    %v984 = vand.u32 %v604, 4294901760
    %v985 = vsub.f32 %v604, %v984
    %v986 = vand.u32 %v985, 4294901760
    %987 = vmatpush1.msra.mxu0 %v986
    %988 = vmatprep.subr.mxu0 0.0
    %v989 = vand.u32 %v605, 4294901760
    %v990 = vsub.f32 %v605, %v989
    %v991 = vand.u32 %v990, 4294901760
    %992 = vmatpush1.msra.mxu0 %v991
    %993 = vmatprep.subr.mxu0 0.0
    %v994 = vand.u32 %v606, 4294901760
    %v995 = vsub.f32 %v606, %v994
    %v996 = vand.u32 %v995, 4294901760
    %997 = vmatpush1.msra.mxu0 %v996
    %998 = vmatprep.subr.mxu0 0.0
    %v999 = vand.u32 %v607, 4294901760
    %v1000 = vsub.f32 %v607, %v999
    %v1001 = vand.u32 %v1000, 4294901760
    %1002 = vmatpush1.msra.mxu0 %v1001
    %1003 = vmatprep.subr.mxu0 0.0
    %v1004 = vand.u32 %v608, 4294901760
    %v1005 = vsub.f32 %v608, %v1004
    %v1006 = vand.u32 %v1005, 4294901760
    %1007 = vmatpush1.msra.mxu0 %v1006
    %1008 = vmatprep.subr.mxu0 0.0
    %v1009 = vand.u32 %v609, 4294901760
    %v1010 = vsub.f32 %v609, %v1009
    %v1011 = vand.u32 %v1010, 4294901760
    %1012 = vmatpush1.msra.mxu0 %v1011
    %1013 = vmatprep.subr.mxu0 0.0
    %1014 = vmatpush1.msra.mxu0 0.0
    %1015 = vmatprep.subr.mxu0 0.0
    %1016 = vmatpush1.msra.mxu0 0.0
    %1017 = vmatprep.subr.mxu0 0.0
    %1018 = vmatpush1.msra.mxu0 0.0
    %1019 = vmatprep.subr.mxu0 0.0
    %1020 = vmatpush1.msra.mxu0 0.0
    %1021 = vmatprep.subr.mxu0 0.0
    %1022 = vmatpush1.msra.mxu0 0.0
    %1023 = vmatprep.subr.mxu0 0.0
    %1024 = vmatpush1.msra.mxu0 0.0
    %1025 = vmatprep.subr.mxu0 0.0
    %1026 = vmatpush1.msra.mxu0 0.0
    %1027 = vmatprep.subr.mxu0 0.0
    %1028 = vmatpush1.msra.mxu0 0.0
    %1029 = vmatprep.subr.mxu0 0.0
    %1030 = vmatpush1.msra.mxu0 0.0
    %1031 = vmatprep.subr.mxu0 0.0
    %1032 = vmatpush1.msra.mxu0 0.0
    %1033 = vmatprep.subr.mxu0 0.0
    %1034 = vmatpush1.msra.mxu0 0.0
    %1035 = vmatprep.subr.mxu0 0.0
    %1036 = vmatpush1.msra.mxu0 0.0
    %1037 = vmatprep.subr.mxu0 0.0
    %1038 = vmatpush1.msra.mxu0 0.0
    %1039 = vmatprep.subr.mxu0 0.0
    %1040 = vmatpush1.msra.mxu0 0.0
    %1041 = vmatprep.subr.mxu0 0.0
    %1042 = vmatpush1.msra.mxu0 0.0
    %1043 = vmatprep.subr.mxu0 0.0
    %1044 = vmatpush1.msra.mxu0 0.0
    %1045 = vmatprep.subr.mxu0 0.0
    %1046 = vmatpush1.msra.mxu0 0.0
    %1047 = vmatprep.subr.mxu0 0.0
    %1048 = vmatpush1.msra.mxu0 0.0
    %1049 = vmatprep.subr.mxu0 0.0
    %1050 = vmatpush1.msra.mxu0 0.0
    %1051 = vmatprep.subr.mxu0 0.0
    %1052 = vmatpush1.msra.mxu0 0.0
    %1053 = vmatprep.subr.mxu0 0.0
    %1054 = vmatpush1.msra.mxu0 0.0
    %1055 = vmatprep.subr.mxu0 0.0
    %1056 = vmatpush1.msra.mxu0 0.0
    %1057 = vmatprep.subr.mxu0 0.0
    %1058 = vmatpush1.msra.mxu0 0.0
    %1059 = vmatprep.subr.mxu0 0.0
    %1060 = vmatpush1.msra.mxu0 0.0
    %1061 = vmatprep.mubr.f32.mxu0 0.0
    %v1062 = vand.u32 %v63, 4294901760
    %1063 = vmatmul.mubr.f32.gmra.mrb[0].mxu0 %v1062
    %v1064 = vpop.f32.mrb[0].mxu0
    %v1065 = vadd.f32 %v970, %v1064
    %v1066 = vpop.f32.mrb[0].mxu0
    %1067 = vdwg.mxu0
    %1068 = vmatprep.subr.mxu0 0.0
    %v1069 = vand.u32 %v602, 4294901760
    %1070 = vmatpush1.msra.mxu0 %v1069
    %1071 = vmatprep.subr.mxu0 0.0
    %v1072 = vand.u32 %v603, 4294901760
    %1073 = vmatpush1.msra.mxu0 %v1072
    %1074 = vmatprep.subr.mxu0 0.0
    %v1075 = vand.u32 %v604, 4294901760
    %1076 = vmatpush1.msra.mxu0 %v1075
    %1077 = vmatprep.subr.mxu0 0.0
    %v1078 = vand.u32 %v605, 4294901760
    %1079 = vmatpush1.msra.mxu0 %v1078
    %1080 = vmatprep.subr.mxu0 0.0
    %v1081 = vand.u32 %v606, 4294901760
    %1082 = vmatpush1.msra.mxu0 %v1081
    %1083 = vmatprep.subr.mxu0 0.0
    %v1084 = vand.u32 %v607, 4294901760
    %1085 = vmatpush1.msra.mxu0 %v1084
    %1086 = vmatprep.subr.mxu0 0.0
    %v1087 = vand.u32 %v608, 4294901760
    %1088 = vmatpush1.msra.mxu0 %v1087
    %1089 = vmatprep.subr.mxu0 0.0
    %v1090 = vand.u32 %v609, 4294901760
    %1091 = vmatpush1.msra.mxu0 %v1090
    %1092 = vmatprep.subr.mxu0 0.0
    %1093 = vmatpush1.msra.mxu0 0.0
    %1094 = vmatprep.subr.mxu0 0.0
    %1095 = vmatpush1.msra.mxu0 0.0
    %1096 = vmatprep.subr.mxu0 0.0
    %1097 = vmatpush1.msra.mxu0 0.0
    %1098 = vmatprep.subr.mxu0 0.0
    %1099 = vmatpush1.msra.mxu0 0.0
    %1100 = vmatprep.subr.mxu0 0.0
    %1101 = vmatpush1.msra.mxu0 0.0
    %1102 = vmatprep.subr.mxu0 0.0
    %1103 = vmatpush1.msra.mxu0 0.0
    %1104 = vmatprep.subr.mxu0 0.0
    %1105 = vmatpush1.msra.mxu0 0.0
    %1106 = vmatprep.subr.mxu0 0.0
    %1107 = vmatpush1.msra.mxu0 0.0
    %1108 = vmatprep.subr.mxu0 0.0
    %1109 = vmatpush1.msra.mxu0 0.0
    %1110 = vmatprep.subr.mxu0 0.0
    %1111 = vmatpush1.msra.mxu0 0.0
    %1112 = vmatprep.subr.mxu0 0.0
    %1113 = vmatpush1.msra.mxu0 0.0
    %1114 = vmatprep.subr.mxu0 0.0
    %1115 = vmatpush1.msra.mxu0 0.0
    %1116 = vmatprep.subr.mxu0 0.0
    %1117 = vmatpush1.msra.mxu0 0.0
    %1118 = vmatprep.subr.mxu0 0.0
    %1119 = vmatpush1.msra.mxu0 0.0
    %1120 = vmatprep.subr.mxu0 0.0
    %1121 = vmatpush1.msra.mxu0 0.0
    %1122 = vmatprep.subr.mxu0 0.0
    %1123 = vmatpush1.msra.mxu0 0.0
    %1124 = vmatprep.subr.mxu0 0.0
    %1125 = vmatpush1.msra.mxu0 0.0
    %1126 = vmatprep.subr.mxu0 0.0
    %1127 = vmatpush1.msra.mxu0 0.0
    %1128 = vmatprep.subr.mxu0 0.0
    %1129 = vmatpush1.msra.mxu0 0.0
    %1130 = vmatprep.subr.mxu0 0.0
    %1131 = vmatpush1.msra.mxu0 0.0
    %1132 = vmatprep.subr.mxu0 0.0
    %1133 = vmatpush1.msra.mxu0 0.0
    %1134 = vmatprep.subr.mxu0 0.0
    %1135 = vmatpush1.msra.mxu0 0.0
    %1136 = vmatprep.subr.mxu0 0.0
    %1137 = vmatpush1.msra.mxu0 0.0
    %1138 = vmatprep.subr.mxu0 0.0
    %1139 = vmatpush1.msra.mxu0 0.0
    %1140 = vmatprep.mubr.f32.mxu0 0.0
    %v1141 = vand.u32 %v63, 4294901760
    %1142 = vmatmul.mubr.f32.gmra.mrb[0].mxu0 %v1141
    %v1143 = vpop.f32.mrb[0].mxu0
    %v1144 = vadd.f32 %v1065, %v1143
    %v1145 = vpop.f32.mrb[0].mxu0
    %1146 = vdwg.mxu0
    %s1147 = sld [smem:[#allocation2]]
    %s1148 = sld [smem:[#allocation2 + $0x1]]
    %s1149 = sld [smem:[#allocation2 + $0x2]]
    %s1150 = sld [smem:[#allocation2 + $0x3]]
    %v1151 = vstv %s1148
    %v1152 = vmul.f32 %v599, %v1151
    %v1154 = vrot.slane %v599, 7
    %v1156 = vsub.f32 %v599, %v1154
    %v1157 = vstv %s1149
    %v1158 = vmul.f32 %v1156, %v1157
    %v1159 = vmul.f32 %v1144, %v1151
    %v1160 = vmul.f32 %v1152, %v1152
    %v1161 = vsub.f32 %v1159, %v1160
    %v1163 = vrot.slane %v1144, 7
    %v1165 = vsub.f32 %v1144, %v1163
    %v1166 = vmul.f32 %v1165, %v1157
    %v1167 = vmul.f32 %v1158, %v1158
    %v1168 = vsub.f32 %v1166, %v1167
    %v1170 = vrot.slane %v1152, 7
    %v1172 = vsub.f32 %v1158, %v1170
    %v1173 = vstv %s1150
    %v1174 = vmul.f32 %v1172, %v1173
    %v1176 = vrot.slane %v1174, 1
    %v1178 = vadd.f32 %v1152, %v1176
    %v1179 = vstv %s1147
    %v1180 = vmul.f32 %v1179, %v1161
    %v1182 = vrot.slane %v1168, 1
    %v1184 = vadd.f32 %v1180, %v1182
    %v1186 = vrot.slane %v1178, 7
    %v1188 = vsub.f32 %v1158, %v1186
    %v1189 = vmul.f32 %v1188, %v1188
    %s1190 = smul.f32 %s1147, %s1150
    %v1191 = vstv %s1190
    %v1192 = vmul.f32 %v1189, %v1191
    %v1194 = vrot.slane %v1192, 1
    %v1196 = vadd.f32 %v1184, %v1194
    %v1197 = vmul.f32 %v1196, %v1173
    %v1198 = vadd.f32 %v1197, 1e-05
    %v1199 = vrsqrt.pop %v1198
    %v1200 = vlaneseq
    %v1201 = vshrl.u32 %v1200, 7
    %v1202 = vsub.s32 0, %v1201
    %v1203 = vrot.slane %v1178, %v1202
    %v1204 = vsub.f32 %v52, %v1203
    %v1205 = vsub.f32 %v53, %v1203
    %v1206 = vsub.f32 %v54, %v1203
    %v1207 = vsub.f32 %v55, %v1203
    %v1208 = vsub.f32 %v56, %v1203
    %v1209 = vsub.f32 %v57, %v1203
    %v1210 = vsub.f32 %v58, %v1203
    %v1211 = vsub.f32 %v59, %v1203
    %v1212 = vlaneseq
    %v1213 = vshrl.u32 %v1212, 7
    %v1214 = vsub.s32 0, %v1213
    %v1215 = vrot.slane %v1199, %v1214
    %v1216 = vmul.f32 %v1204, %v1215
    %v1217 = vmul.f32 %v1205, %v1215
    %v1218 = vmul.f32 %v1206, %v1215
    %v1219 = vmul.f32 %v1207, %v1215
    %v1220 = vmul.f32 %v1208, %v1215
    %v1221 = vmul.f32 %v1209, %v1215
    %v1222 = vmul.f32 %v1210, %v1215
    %v1223 = vmul.f32 %v1211, %v1215
    %1224 = vst [vmem:[#allocation9] sm:$0xff] %v1216
    %1225 = vst [vmem:[#allocation9 + $0x8] sm:$0xff] %v1217
    %1226 = vst [vmem:[#allocation9 + $0x10] sm:$0xff] %v1218
    %1227 = vst [vmem:[#allocation9 + $0x18] sm:$0xff] %v1219
    %1228 = vst [vmem:[#allocation9 + $0x20] sm:$0xff] %v1220
    %1229 = vst [vmem:[#allocation9 + $0x28] sm:$0xff] %v1221
    %1230 = vst [vmem:[#allocation9 + $0x30] sm:$0xff] %v1222
    %1231 = vst [vmem:[#allocation9 + $0x38] sm:$0xff] %v1223
    // Predicated region
    $region26: #{tpu_custom_call.1} parent=1 // pred_check
      _
    $region27: #{tpu_custom_call.1} parent=1 // pred_check_branch
      %1233 = sbr.rel (0) target = $region29
    $region28: #{tpu_custom_call.1} parent=1 // pred_region
      %s1235 = ssub.s32 1024, 1024
      %1236 = vsyncadd [#allocation4], %s1235
      %s1237 = sshll.u32 [#allocation9], 4
      %s1238 = int_to_ptr.vmem [resolvable:$true] %s1237
      %1243 = dma.vmem_to_hbm [thread:$0]  %s1238, 1024, %s3, [#allocation4], 128, 128, 8
    $region29: #{tpu_custom_call.1} parent=1 // pred_fallthru
      _
    // Predicated region
    $region30: #{tpu_custom_call.1} parent=1 // pred_check
      _
    $region31: #{tpu_custom_call.1} parent=1 // pred_check_branch
      %1245 = sbr.rel (0) target = $region33
    $region32: #{tpu_custom_call.1} parent=1 // pred_region
      %1246 = dma.done [#allocation4], 1024
    $region33: #{tpu_custom_call.1} parent=1 // pred_fallthru
      _
    %1247 = vsyncpa [#allocation3], 1
    %1248 = vsyncpa [#allocation8], 1
    %1249 = vsyncpa [#allocation4], 1
    %1250 = vsyncpa [#allocation5], 1

</llo_original>
